<compile_context>
chip_gen: v7x
topology: tpu7x:2x2x1
jax: 0.10.0
libtpu: 0.0.40
codegen_flags: <defaults>
</compile_context>

<pallas_src>
import functools

import jax
import jax.numpy as jnp
from jax.experimental import pallas as pl
from jax.experimental.pallas import tpu as pltpu


# ------------------------------------------------------------------ kernel ---
def _policy_kernel(s_dim, din, hid, has_noise, *refs):
    """refs = (ob, c, [gumbel], p1, p2, p3, out)

    p1 = [W1 ; b1]  shape (din+1, H)   bf16
    p2 = [W2 ; b2]  shape (H+1,  H)    bf16
    p3 = [W3 ; b3]  shape (H+1,  A)    bf16
    out = (B, 2) f32 : column 0 = log_prob(action), column 1 = action (as f32)
    """
    if has_noise:
        ob_ref, c_ref, g_ref, p1_ref, p2_ref, p3_ref, out_ref = refs
    else:
        ob_ref, c_ref, p1_ref, p2_ref, p3_ref, out_ref = refs
        g_ref = None

    ob = ob_ref[...].astype(jnp.bfloat16)
    cv = c_ref[...].astype(jnp.bfloat16)

    # ---- layer 1: fused concat -> split matmul, ReLU -----------------------
    w1a = p1_ref[0:s_dim, :]                    # (s_dim, H) bf16
    w1b = p1_ref[s_dim:din, :]                  # (c_dim, H) bf16
    b1 = p1_ref[din:din + 1, :].astype(jnp.float32)
    h1 = (jnp.dot(ob, w1a, preferred_element_type=jnp.float32)
          + jnp.dot(cv, w1b, preferred_element_type=jnp.float32)
          + b1)
    h1 = jnp.maximum(h1, 0.0).astype(jnp.bfloat16)

    # ---- layer 2: Linear, ReLU ---------------------------------------------
    w2 = p2_ref[0:hid, :]
    b2 = p2_ref[hid:hid + 1, :].astype(jnp.float32)
    h2 = jnp.maximum(
        jnp.dot(h1, w2, preferred_element_type=jnp.float32) + b2, 0.0
    ).astype(jnp.bfloat16)

    # ---- Categorical head: logits ------------------------------------------
    w3 = p3_ref[0:hid, :]
    b3 = p3_ref[hid:hid + 1, :].astype(jnp.float32)
    logits = jnp.dot(h2, w3, preferred_element_type=jnp.float32) + b3

    # ---- stable log-softmax --------------------------------------------------
    m = jnp.max(logits, axis=-1, keepdims=True)
    z = logits - m
    lse = jnp.log(jnp.sum(jnp.exp(z), axis=-1, keepdims=True))
    logp = z - lse                                                # (B, A)

    tb, na = logits.shape
    col = jax.lax.broadcasted_iota(jnp.int32, (tb, na), 1)

    # ---- Gumbel-max sampling / mode ------------------------------------------
    if has_noise:
        perturbed = logits + g_ref[...]
        pmax = jnp.max(perturbed, axis=-1, keepdims=True)
    else:
        perturbed = logits
        pmax = m                      # reuse the log-softmax max (one fewer XLU reduce)
    is_max = perturbed >= pmax
    action = jnp.min(jnp.where(is_max, col, na), axis=-1, keepdims=True)  # (B, 1)

    # dist.log_probs(action): gather log_softmax at the sampled index
    logp_a = jnp.sum(jnp.where(col == action, logp, 0.0),
                     axis=-1, keepdims=True)                      # (B, 1)

    # Merge both results into one (B, 2) output (single writeback DMA).
    out_col = jax.lax.broadcasted_iota(jnp.int32, (tb, 2), 1)
    out_ref[...] = jnp.where(out_col == 0, logp_a, action.astype(jnp.float32))


# ----------------------------------------------------------------- wrapper ---
@functools.partial(jax.jit, static_argnames=("deterministic",))
def policy_forward(ob, c, params, gumbel, deterministic=False):
    """Returns (action [B] int32, log_probs [B, 1] float32)."""
    p1, p2, p3 = params
    B, s_dim = ob.shape
    din = s_dim + c.shape[1]
    hid = p2.shape[1]

    kernel = functools.partial(_policy_kernel, s_dim, din, hid, not deterministic)

    if deterministic:
        operands = (ob, c, p1, p2, p3)          # no gumbel DMA at all
    else:
        operands = (ob, c, gumbel, p1, p2, p3)

    vmem = lambda: pl.BlockSpec(memory_space=pltpu.MemorySpace.VMEM)
    out = pl.pallas_call(
        kernel,
        out_shape=jax.ShapeDtypeStruct((B, 2), jnp.float32),
        in_specs=[vmem() for _ in operands],
        out_specs=vmem(),
    )(*operands)

    log_probs = out[:, 0:1]
    action = out[:, 1].astype(jnp.int32)
    return action, log_probs


# --------------------------------------------------------------- init glue ---
def init_policy_params(key, s_dim, c_dim, a_dim, hidden=128, dtype=jnp.bfloat16):
    """Orthogonal init (gain=sqrt(2) for ReLU layers, 0.01 for the Categorical
    head), zero biases — matches the module's init_ helper.  Weight and bias of
    each layer are packed into a single [W ; b] array (fewer DMA descriptors)."""
    k1, k2, k3 = jax.random.split(key, 3)
    relu_gain = float(jnp.sqrt(2.0))
    ortho = jax.nn.initializers.orthogonal
    w1 = ortho(scale=relu_gain)(k1, (s_dim + c_dim, hidden), jnp.float32)
    w2 = ortho(scale=relu_gain)(k2, (hidden, hidden), jnp.float32)
    w3 = ortho(scale=0.01)(k3, (hidden, a_dim), jnp.float32)
    b1 = jnp.zeros((1, hidden), jnp.float32)
    b2 = jnp.zeros((1, hidden), jnp.float32)
    b3 = jnp.zeros((1, a_dim), jnp.float32)
    p1 = jnp.concatenate([w1, b1], axis=0).astype(dtype)   # (s+c+1, H)
    p2 = jnp.concatenate([w2, b2], axis=0).astype(dtype)   # (H+1,  H)
    p3 = jnp.concatenate([w3, b3], axis=0).astype(dtype)   # (H+1,  A)
    return (p1, p2, p3)


# --------------------------------------------------------------------- main --
if __name__ == "__main__":
    B, S_DIM, C_DIM, A_DIM, HID = 8, 16, 8, 6, 128
    DIN = S_DIM + C_DIM

    key = jax.random.PRNGKey(0)
    k_ob, k_c, k_p, k_g = jax.random.split(key, 4)

    ob = jax.random.normal(k_ob, (B, S_DIM), jnp.float32)
    c = jax.random.normal(k_c, (B, C_DIM), jnp.float32)
    params = init_policy_params(k_p, S_DIM, C_DIM, A_DIM, HID)
    gumbel = jax.random.gumbel(k_g, (B, A_DIM), jnp.float32)  # noise for dist.sample()

    # stochastic forward (default deterministic=False in the PyTorch module)
    action, log_probs = policy_forward(ob, c, params, gumbel, deterministic=False)
    jax.block_until_ready((action, log_probs))

    # deterministic path (dist.mode())
    action_det, logp_det = policy_forward(ob, c, params, gumbel, deterministic=True)
    jax.block_until_ready((action_det, logp_det))

    # ---- pure-JAX reference (mirrors the kernel's bf16 weight / f32 acc path) --
    p1, p2, p3 = params
    w1a, w1b, b1 = p1[:S_DIM], p1[S_DIM:DIN], p1[DIN:DIN + 1].astype(jnp.float32)
    w2, b2 = p2[:HID], p2[HID:HID + 1].astype(jnp.float32)
    w3, b3 = p3[:HID], p3[HID:HID + 1].astype(jnp.float32)

    h1 = jnp.maximum(
        jnp.dot(ob.astype(jnp.bfloat16), w1a, preferred_element_type=jnp.float32)
        + jnp.dot(c.astype(jnp.bfloat16), w1b, preferred_element_type=jnp.float32)
        + b1, 0.0)
    h2 = jnp.maximum(
        jnp.dot(h1.astype(jnp.bfloat16), w2, preferred_element_type=jnp.float32)
        + b2, 0.0)
    logits = jnp.dot(h2.astype(jnp.bfloat16), w3,
                     preferred_element_type=jnp.float32) + b3
    ref_logp_all = jax.nn.log_softmax(logits, axis=-1)
    ref_action = jnp.argmax(logits, axis=-1).astype(jnp.int32)
    ref_logp = jnp.take_along_axis(ref_logp_all, ref_action[:, None], axis=-1)

    assert action.shape == (B,) and action.dtype == jnp.int32
    assert log_probs.shape == (B, 1) and log_probs.dtype == jnp.float32
    assert bool(jnp.all(action_det == ref_action))
    assert bool(jnp.allclose(logp_det, ref_logp, atol=2e-3))
    # stochastic: log_prob must equal the reference log-softmax at the sampled index
    ref_logp_sampled = jnp.take_along_axis(ref_logp_all, action[:, None], axis=-1)
    assert bool(jnp.allclose(log_probs, ref_logp_sampled, atol=2e-3))

    print("KERNEL_OK")
</pallas_src>

<mosaic_0001>
module attributes {stable_mosaic.version = 11 : i64} {
  func.func @_policy_kernel(%arg0: memref<8x16xf32, #tpu.memory_space<vmem>>, %arg1: memref<8x8xf32, #tpu.memory_space<vmem>>, %arg2: memref<8x6xf32, #tpu.memory_space<vmem>>, %arg3: memref<25x128xbf16, #tpu.memory_space<vmem>>, %arg4: memref<129x128xbf16, #tpu.memory_space<vmem>>, %arg5: memref<129x6xbf16, #tpu.memory_space<vmem>>, %arg6: memref<8x2xf32, #tpu.memory_space<vmem>>) attributes {dimension_semantics = [], scalar_prefetch = 0 : i64, scratch_operands = 0 : i64, tpu.core_type = #tpu.core_type<tc>} {
    %c0 = arith.constant 0 : index
    %c0_0 = arith.constant 0 : index
    %0 = vector.load %arg0[%c0, %c0_0] : memref<8x16xf32, #tpu.memory_space<vmem>>, vector<8x16xf32>
    %1 = arith.truncf %0 : vector<8x16xf32> to vector<8x16xbf16>
    %c0_1 = arith.constant 0 : index
    %c0_2 = arith.constant 0 : index
    %2 = vector.load %arg1[%c0_1, %c0_2] : memref<8x8xf32, #tpu.memory_space<vmem>>, vector<8x8xf32>
    %3 = arith.truncf %2 : vector<8x8xf32> to vector<8x8xbf16>
    %c0_3 = arith.constant 0 : index
    %c0_4 = arith.constant 0 : index
    %4 = vector.load %arg3[%c0_3, %c0_4] : memref<25x128xbf16, #tpu.memory_space<vmem>>, vector<16x128xbf16>
    %c16 = arith.constant 16 : index
    %c0_5 = arith.constant 0 : index
    %5 = vector.load %arg3[%c16, %c0_5] : memref<25x128xbf16, #tpu.memory_space<vmem>>, vector<8x128xbf16>
    %c24 = arith.constant 24 : index
    %c0_6 = arith.constant 0 : index
    %6 = vector.load %arg3[%c24, %c0_6] : memref<25x128xbf16, #tpu.memory_space<vmem>>, vector<1x128xbf16>
    %7 = arith.extf %6 : vector<1x128xbf16> to vector<1x128xf32>
    %cst = arith.constant dense<0.000000e+00> : vector<8x128xf32>
    %8 = tpu.matmul %1, %4, %cst {dimension_numbers = #tpu.dot_dimension_numbers<[1], [0], [0], [1], [0, 0, 1, 1], [], []>} : vector<8x16xbf16>, vector<16x128xbf16>, vector<8x128xf32> -> vector<8x128xf32>
    %cst_7 = arith.constant dense<0.000000e+00> : vector<8x128xf32>
    %9 = tpu.matmul %3, %5, %cst_7 {dimension_numbers = #tpu.dot_dimension_numbers<[1], [0], [0], [1], [0, 0, 1, 1], [], []>} : vector<8x8xbf16>, vector<8x128xbf16>, vector<8x128xf32> -> vector<8x128xf32>
    %10 = arith.addf %8, %9 : vector<8x128xf32>
    %11 = vector.broadcast %7 : vector<1x128xf32> to vector<8x128xf32>
    %12 = arith.addf %10, %11 : vector<8x128xf32>
    %cst_8 = arith.constant 0.000000e+00 : f32
    %13 = vector.broadcast %cst_8 : f32 to vector<8x128xf32>
    %14 = arith.maximumf %12, %13 : vector<8x128xf32>
    %15 = arith.truncf %14 : vector<8x128xf32> to vector<8x128xbf16>
    %c0_9 = arith.constant 0 : index
    %c0_10 = arith.constant 0 : index
    %16 = vector.load %arg4[%c0_9, %c0_10] : memref<129x128xbf16, #tpu.memory_space<vmem>>, vector<128x128xbf16>
    %c128 = arith.constant 128 : index
    %c0_11 = arith.constant 0 : index
    %17 = vector.load %arg4[%c128, %c0_11] : memref<129x128xbf16, #tpu.memory_space<vmem>>, vector<1x128xbf16>
    %18 = arith.extf %17 : vector<1x128xbf16> to vector<1x128xf32>
    %cst_12 = arith.constant dense<0.000000e+00> : vector<8x128xf32>
    %19 = tpu.matmul %15, %16, %cst_12 {dimension_numbers = #tpu.dot_dimension_numbers<[1], [0], [0], [1], [0, 0, 1, 1], [], []>} : vector<8x128xbf16>, vector<128x128xbf16>, vector<8x128xf32> -> vector<8x128xf32>
    %20 = vector.broadcast %18 : vector<1x128xf32> to vector<8x128xf32>
    %21 = arith.addf %19, %20 : vector<8x128xf32>
    %cst_13 = arith.constant 0.000000e+00 : f32
    %22 = vector.broadcast %cst_13 : f32 to vector<8x128xf32>
    %23 = arith.maximumf %21, %22 : vector<8x128xf32>
    %24 = arith.truncf %23 : vector<8x128xf32> to vector<8x128xbf16>
    %c0_14 = arith.constant 0 : index
    %c0_15 = arith.constant 0 : index
    %25 = vector.load %arg5[%c0_14, %c0_15] : memref<129x6xbf16, #tpu.memory_space<vmem>>, vector<128x6xbf16>
    %c128_16 = arith.constant 128 : index
    %c0_17 = arith.constant 0 : index
    %26 = vector.load %arg5[%c128_16, %c0_17] : memref<129x6xbf16, #tpu.memory_space<vmem>>, vector<1x6xbf16>
    %27 = arith.extf %26 : vector<1x6xbf16> to vector<1x6xf32>
    %cst_18 = arith.constant dense<0.000000e+00> : vector<8x6xf32>
    %28 = tpu.matmul %24, %25, %cst_18 {dimension_numbers = #tpu.dot_dimension_numbers<[1], [0], [0], [1], [0, 0, 1, 1], [], []>} : vector<8x128xbf16>, vector<128x6xbf16>, vector<8x6xf32> -> vector<8x6xf32>
    %29 = vector.broadcast %27 : vector<1x6xf32> to vector<8x6xf32>
    %30 = arith.addf %28, %29 : vector<8x6xf32>
    %cst_19 = arith.constant dense<0xFF800000> : vector<8xf32>
    %31 = vector.multi_reduction <maximumf>, %30, %cst_19 [1] : vector<8x6xf32> to vector<8xf32>
    %32 = vector.shape_cast %31 : vector<8xf32> to vector<8x1xf32>
    %33 = vector.broadcast %32 : vector<8x1xf32> to vector<8x6xf32>
    %34 = arith.subf %30, %33 : vector<8x6xf32>
    %35 = math.exp %34 : vector<8x6xf32>
    %cst_20 = arith.constant dense<0.000000e+00> : vector<8xf32>
    %36 = vector.multi_reduction <add>, %35, %cst_20 [1] : vector<8x6xf32> to vector<8xf32>
    %37 = vector.shape_cast %36 : vector<8xf32> to vector<8x1xf32>
    %38 = math.log %37 : vector<8x1xf32>
    %39 = vector.broadcast %38 : vector<8x1xf32> to vector<8x6xf32>
    %40 = arith.subf %34, %39 : vector<8x6xf32>
    %41 = tpu.iota {dimensions = array<i32: 1>} : vector<8x6xi32>
    %c0_21 = arith.constant 0 : index
    %c0_22 = arith.constant 0 : index
    %42 = vector.load %arg2[%c0_21, %c0_22] : memref<8x6xf32, #tpu.memory_space<vmem>>, vector<8x6xf32>
    %43 = arith.addf %30, %42 : vector<8x6xf32>
    %cst_23 = arith.constant dense<0xFF800000> : vector<8xf32>
    %44 = vector.multi_reduction <maximumf>, %43, %cst_23 [1] : vector<8x6xf32> to vector<8xf32>
    %45 = vector.shape_cast %44 : vector<8xf32> to vector<8x1xf32>
    %46 = vector.broadcast %45 : vector<8x1xf32> to vector<8x6xf32>
    %47 = arith.cmpf oge, %43, %46 : vector<8x6xf32>
    %c6_i32 = arith.constant 6 : i32
    %48 = vector.broadcast %c6_i32 : i32 to vector<8x6xi32>
    %49 = arith.select %47, %41, %48 : vector<8x6xi1>, vector<8x6xi32>
    %cst_24 = arith.constant dense<2147483647> : vector<8xi32>
    %50 = vector.multi_reduction <minsi>, %49, %cst_24 [1] : vector<8x6xi32> to vector<8xi32>
    %51 = vector.shape_cast %50 : vector<8xi32> to vector<8x1xi32>
    %52 = vector.broadcast %51 : vector<8x1xi32> to vector<8x6xi32>
    %53 = arith.cmpi eq, %41, %52 : vector<8x6xi32>
    %cst_25 = arith.constant 0.000000e+00 : f32
    %54 = vector.broadcast %cst_25 : f32 to vector<8x6xf32>
    %55 = arith.select %53, %40, %54 : vector<8x6xi1>, vector<8x6xf32>
    %cst_26 = arith.constant dense<0.000000e+00> : vector<8xf32>
    %56 = vector.multi_reduction <add>, %55, %cst_26 [1] : vector<8x6xf32> to vector<8xf32>
    %57 = vector.shape_cast %56 : vector<8xf32> to vector<8x1xf32>
    %58 = tpu.iota {dimensions = array<i32: 1>} : vector<8x2xi32>
    %c0_i32 = arith.constant 0 : i32
    %59 = vector.broadcast %c0_i32 : i32 to vector<8x2xi32>
    %60 = arith.cmpi eq, %58, %59 : vector<8x2xi32>
    %61 = arith.sitofp %51 : vector<8x1xi32> to vector<8x1xf32>
    %62 = vector.shape_cast %57 : vector<8x1xf32> to vector<8x1xf32>
    %63 = vector.broadcast %62 : vector<8x1xf32> to vector<8x2xf32>
    %64 = vector.shape_cast %61 : vector<8x1xf32> to vector<8x1xf32>
    %65 = vector.broadcast %64 : vector<8x1xf32> to vector<8x2xf32>
    %66 = arith.select %60, %63, %65 : vector<8x2xi1>, vector<8x2xf32>
    %c0_27 = arith.constant 0 : index
    %c0_28 = arith.constant 0 : index
    %67 = vector.load %arg6[%c0_27, %c0_28] : memref<8x2xf32, #tpu.memory_space<vmem>>, vector<8x2xf32>
    tpu.vector_store %arg6[%c0_27, %c0_28], %66 {strides = array<i32>} : memref<8x2xf32, #tpu.memory_space<vmem>>, vector<8x2xf32>,
    return
  }
}

</mosaic_0001>

<llo_original>
// kernel: policy_forward.1
$region0: #{policy_forward.1}
  #allocation0 [shape = 'u32[]', space=smem, size = 0x4, offset = 0x4, fixed_abs, tag = 'smem constant byte address 0x4 - core index']
  #allocation1 [shape = 'u32[144,128]{1,0:T(1,128)}', space=vmem, size = 0x12000, scoped, tag = 'internal scratch']
  %s0 = inlined_call_operand.hbm [shape: f32[8,16], index: 0, kind: input, shape index: {}]
  %s1 = inlined_call_operand.hbm [shape: f32[8,8], index: 1, kind: input, shape index: {}]
  %s2 = inlined_call_operand.vmem [shape: f32[8,6], index: 2, kind: input, shape index: {}]
  %s3 = inlined_call_operand.vmem [shape: bf16[25,128], index: 3, kind: input, shape index: {}]
  %s4 = inlined_call_operand.vmem [shape: bf16[129,128], index: 4, kind: input, shape index: {}]
  %s5 = inlined_call_operand.vmem [shape: bf16[129,6], index: 5, kind: input, shape index: {}]
  %s6 = inlined_call_operand.vmem [shape: f32[8,2], index: 6, kind: output, shape index: {}]
  %s7 = sld [smem:[#allocation0]]
  $region42: #{policy_forward.1} parent=0
    _
  %s9 = ssub.s32 1, %s7
  %s10 = scalar_select 0, %s9, %s7
  $region1: #{policy_forward.1} parent=0
    #allocation2 [shape = 'u8[4096]{0}', space=vmem, size = 0x1000, scoped, tag = 'input window, operand 0, single buffered']
    #allocation3 [shape = 's32[1]{0}', space=sflag, size = 0x4, scoped, tag = 'scoped memory for policy_forward.1']
    #allocation4 [shape = 'u8[4096]{0}', space=vmem, size = 0x1000, scoped, tag = 'input window, operand 1, single buffered']
    #allocation5 [shape = 's32[1]{0}', space=sflag, size = 0x4, scoped, tag = 'scoped memory for policy_forward.1']
    %11 = vsyncpa [#allocation3], 0
    %12 = vsyncpa [#allocation5], 0
    // Predicated region
    $region2: #{policy_forward.1} parent=1 // pred_check
      _
    $region3: #{policy_forward.1} parent=1 // pred_check_branch
      %14 = sbr.rel (0) target = $region5
    $region4: #{policy_forward.1} parent=1 // pred_region
      %s16 = ssub.s32 128, 128
      %17 = vsyncadd [#allocation3], %s16
      %s19 = sshll.u32 [#allocation2], 4
      %s20 = int_to_ptr.vmem [resolvable:$true] %s19
      %22 = dma.hbm_to_vmem [thread:$0]  %s0, 128, %s20, [#allocation3]
    $region5: #{policy_forward.1} parent=1 // pred_fallthru
      _
    // Predicated region
    $region6: #{policy_forward.1} parent=1 // pred_check
      _
    $region7: #{policy_forward.1} parent=1 // pred_check_branch
      %24 = sbr.rel (0) target = $region9
    $region8: #{policy_forward.1} parent=1 // pred_region
      %s26 = ssub.s32 128, 128
      %27 = vsyncadd [#allocation5], %s26
      %s29 = sshll.u32 [#allocation4], 4
      %s30 = int_to_ptr.vmem [resolvable:$true] %s29
      %32 = dma.hbm_to_vmem [thread:$0]  %s1, 128, %s30, [#allocation5]
    $region9: #{policy_forward.1} parent=1 // pred_fallthru
      _
    // Predicated region
    $region10: #{policy_forward.1} parent=1 // pred_check
      _
    $region11: #{policy_forward.1} parent=1 // pred_check_branch
      %34 = sbr.rel (0) target = $region13
    $region12: #{policy_forward.1} parent=1 // pred_region
      _
    $region13: #{policy_forward.1} parent=1 // pred_fallthru
      _
    // Predicated region
    $region14: #{policy_forward.1} parent=1 // pred_check
      _
    $region15: #{policy_forward.1} parent=1 // pred_check_branch
      %36 = sbr.rel (0) target = $region17
    $region16: #{policy_forward.1} parent=1 // pred_region
      _
    $region17: #{policy_forward.1} parent=1 // pred_fallthru
      _
    // Predicated region
    $region18: #{policy_forward.1} parent=1 // pred_check
      _
    $region19: #{policy_forward.1} parent=1 // pred_check_branch
      %38 = sbr.rel (0) target = $region21
    $region20: #{policy_forward.1} parent=1 // pred_region
      _
    $region21: #{policy_forward.1} parent=1 // pred_fallthru
      _
    // Predicated region
    $region22: #{policy_forward.1} parent=1 // pred_check
      _
    $region23: #{policy_forward.1} parent=1 // pred_check_branch
      %40 = sbr.rel (0) target = $region25
    $region24: #{policy_forward.1} parent=1 // pred_region
      _
    $region25: #{policy_forward.1} parent=1 // pred_fallthru
      _
    // Predicated region
    $region26: #{policy_forward.1} parent=1 // pred_check
      _
    $region27: #{policy_forward.1} parent=1 // pred_check_branch
      %42 = sbr.rel (0) target = $region29
    $region28: #{policy_forward.1} parent=1 // pred_region
      %43 = dma.done [#allocation3], 128
    $region29: #{policy_forward.1} parent=1 // pred_fallthru
      _
    // Predicated region
    $region30: #{policy_forward.1} parent=1 // pred_check
      _
    $region31: #{policy_forward.1} parent=1 // pred_check_branch
      %45 = sbr.rel (0) target = $region33
    $region32: #{policy_forward.1} parent=1 // pred_region
      %46 = dma.done [#allocation5], 128
    $region33: #{policy_forward.1} parent=1 // pred_fallthru
      _
    %v48 = vld [vmem:[#allocation2] sm:$0xff]
    %v49 = vpack.c.bf16 %v48, %v48
    %v50 = vld [vmem:[#allocation4] sm:$0xff]
    %v51 = vpack.c.bf16 %v50, %v50
    %v52 = vld [vmem:[%s3] sm:$0xf]
    %v53 = vld [vmem:[%s3 + $0x4] sm:$0xf]
    %v54 = vld [vmem:[%s3 + $0x8] sm:$0xf]
    %v55 = vld [vmem:[%s3 + $0xc] sm:$0x1]
    %v56 = vunpack.c.l.bf16 %v55
    %vm57 = vcmask 64512
    %v59 = vsel %vm57, %v51, 0
    %vm61 = vcmask 1043456
    %v63 = vsel %vm61, %v54, 0
    %65 = vmatprep.subr.bf16.mxu0 0
    %66 = vmatpush1.bf16.msra.mxu0 %v63
    %67 = vmatprep.subr.bf16.mxu0 0
    %68 = vmatpush1.bf16.msra.mxu0 0
    %69 = vmatprep.subr.bf16.mxu0 0
    %70 = vmatpush1.bf16.msra.mxu0 0
    %71 = vmatprep.subr.bf16.mxu0 0
    %72 = vmatpush1.bf16.msra.mxu0 0
    %73 = vmatprep.subr.bf16.mxu0 0
    %74 = vmatpush1.bf16.msra.mxu0 0
    %75 = vmatprep.subr.bf16.mxu0 0
    %76 = vmatpush1.bf16.msra.mxu0 0
    %77 = vmatprep.subr.bf16.mxu0 0
    %78 = vmatpush1.bf16.msra.mxu0 0
    %79 = vmatprep.subr.bf16.mxu0 0
    %80 = vmatpush1.bf16.msra.mxu0 0
    %81 = vmatprep.subr.bf16.mxu0 0
    %82 = vmatpush1.bf16.msra.mxu0 0
    %83 = vmatprep.subr.bf16.mxu0 0
    %84 = vmatpush1.bf16.msra.mxu0 0
    %85 = vmatprep.subr.bf16.mxu0 0
    %86 = vmatpush1.bf16.msra.mxu0 0
    %87 = vmatprep.subr.bf16.mxu0 0
    %88 = vmatpush1.bf16.msra.mxu0 0
    %89 = vmatprep.subr.bf16.mxu0 0
    %90 = vmatpush1.bf16.msra.mxu0 0
    %91 = vmatprep.subr.bf16.mxu0 0
    %92 = vmatpush1.bf16.msra.mxu0 0
    %93 = vmatprep.subr.bf16.mxu0 0
    %94 = vmatpush1.bf16.msra.mxu0 0
    %95 = vmatprep.subr.bf16.mxu0 0
    %96 = vmatpush1.bf16.msra.mxu0 0
    %97 = vmatprep.mubr.bf16.mxu0 0
    %98 = vmatmul.mubr.bf16.gmra.mrb[0].mxu0 %v59
    %v99 = vpop.f32.mrb[0].mxu0
    %v100 = vadd.f32 0.0, %v99
    %v101 = vpop.f32.mrb[0].mxu0
    %v102 = vpop.f32.mrb[0].mxu0
    %v103 = vpop.f32.mrb[0].mxu0
    %104 = vdwg.mxu0
    %v107 = vunpack.c.l.b16 %v52
    %v108 = vunpack.c.l.b16 %v53
    %v109 = vpack.c.b16 %v108, %v107
    %vm111 = vcmask 130048
    %v113 = vsel %vm111, %v49, 0
    %115 = vmatprep.subr.bf16.mxu0 0
    %116 = vmatpush1.bf16.msra.mxu0 %v109
    %117 = vmatprep.subr.bf16.mxu0 0
    %118 = vmatpush1.bf16.msra.mxu0 0
    %119 = vmatprep.subr.bf16.mxu0 0
    %120 = vmatpush1.bf16.msra.mxu0 0
    %121 = vmatprep.subr.bf16.mxu0 0
    %122 = vmatpush1.bf16.msra.mxu0 0
    %123 = vmatprep.subr.bf16.mxu0 0
    %124 = vmatpush1.bf16.msra.mxu0 0
    %125 = vmatprep.subr.bf16.mxu0 0
    %126 = vmatpush1.bf16.msra.mxu0 0
    %127 = vmatprep.subr.bf16.mxu0 0
    %128 = vmatpush1.bf16.msra.mxu0 0
    %129 = vmatprep.subr.bf16.mxu0 0
    %130 = vmatpush1.bf16.msra.mxu0 0
    %131 = vmatprep.subr.bf16.mxu0 0
    %132 = vmatpush1.bf16.msra.mxu0 0
    %133 = vmatprep.subr.bf16.mxu0 0
    %134 = vmatpush1.bf16.msra.mxu0 0
    %135 = vmatprep.subr.bf16.mxu0 0
    %136 = vmatpush1.bf16.msra.mxu0 0
    %137 = vmatprep.subr.bf16.mxu0 0
    %138 = vmatpush1.bf16.msra.mxu0 0
    %139 = vmatprep.subr.bf16.mxu0 0
    %140 = vmatpush1.bf16.msra.mxu0 0
    %141 = vmatprep.subr.bf16.mxu0 0
    %142 = vmatpush1.bf16.msra.mxu0 0
    %143 = vmatprep.subr.bf16.mxu0 0
    %144 = vmatpush1.bf16.msra.mxu0 0
    %145 = vmatprep.subr.bf16.mxu0 0
    %146 = vmatpush1.bf16.msra.mxu0 0
    %147 = vmatprep.mubr.bf16.mxu0 0
    %148 = vmatmul.mubr.bf16.gmra.mrb[0].mxu0 %v113
    %v149 = vpop.f32.mrb[0].mxu0
    %v150 = vadd.f32 %v100, %v149
    %v151 = vpop.f32.mrb[0].mxu0
    %v152 = vpop.f32.mrb[0].mxu0
    %v153 = vpop.f32.mrb[0].mxu0
    %154 = vdwg.mxu0
    %v155 = vlaneseq
    %v156 = vshrl.u32 %v155, 7
    %v157 = vsub.s32 0, %v156
    %v158 = vrot.slane %v56, %v157
    %v159 = vadd.f32 %v150, %v158
    %v160 = vmax.f32 %v159, 0.0
    %v161 = vpack.c.bf16 %v160, %v160
    %v162 = vld [vmem:[%s4] sm:$0xf]
    %v163 = vld [vmem:[%s4 + $0x4] sm:$0xf]
    %v164 = vld [vmem:[%s4 + $0x8] sm:$0xf]
    %v165 = vld [vmem:[%s4 + $0xc] sm:$0xf]
    %v166 = vld [vmem:[%s4 + $0x10] sm:$0xf]
    %v167 = vld [vmem:[%s4 + $0x14] sm:$0xf]
    %v168 = vld [vmem:[%s4 + $0x18] sm:$0xf]
    %v169 = vld [vmem:[%s4 + $0x1c] sm:$0xf]
    %v170 = vld [vmem:[%s4 + $0x20] sm:$0xf]
    %v171 = vld [vmem:[%s4 + $0x24] sm:$0xf]
    %v172 = vld [vmem:[%s4 + $0x28] sm:$0xf]
    %v173 = vld [vmem:[%s4 + $0x2c] sm:$0xf]
    %v174 = vld [vmem:[%s4 + $0x30] sm:$0xf]
    %v175 = vld [vmem:[%s4 + $0x34] sm:$0xf]
    %v176 = vld [vmem:[%s4 + $0x38] sm:$0xf]
    %v177 = vld [vmem:[%s4 + $0x3c] sm:$0xf]
    %v178 = vld [vmem:[%s4 + $0x40] sm:$0x1]
    %v179 = vunpack.c.l.bf16 %v178
    %v180 = vlaneseq
    %v181 = vshrl.u32 %v180, 7
    %v182 = vsub.s32 0, %v181
    %v183 = vrot.slane %v179, %v182
    %v200 = vunpack.c.l.b16 %v162
    %v201 = vunpack.c.l.b16 %v163
    %v202 = vunpack.c.l.b16 %v164
    %v203 = vunpack.c.l.b16 %v165
    %v204 = vunpack.c.l.b16 %v166
    %v205 = vunpack.c.l.b16 %v167
    %v206 = vunpack.c.l.b16 %v168
    %v207 = vunpack.c.l.b16 %v169
    %v208 = vunpack.c.l.b16 %v170
    %v209 = vunpack.c.l.b16 %v171
    %v210 = vunpack.c.l.b16 %v172
    %v211 = vunpack.c.l.b16 %v173
    %v212 = vunpack.c.l.b16 %v174
    %v213 = vunpack.c.l.b16 %v175
    %v214 = vunpack.c.l.b16 %v176
    %v215 = vunpack.c.l.b16 %v177
    %v216 = vpack.c.b16 %v201, %v200
    %v217 = vpack.c.b16 %v203, %v202
    %v218 = vpack.c.b16 %v205, %v204
    %v219 = vpack.c.b16 %v207, %v206
    %v220 = vpack.c.b16 %v209, %v208
    %v221 = vpack.c.b16 %v211, %v210
    %v222 = vpack.c.b16 %v213, %v212
    %v223 = vpack.c.b16 %v215, %v214
    %232 = vmatprep.subr.bf16.mxu0 0
    %233 = vmatpush1.bf16.msra.mxu0 %v216
    %234 = vmatprep.subr.bf16.mxu0 0
    %235 = vmatpush1.bf16.msra.mxu0 %v217
    %236 = vmatprep.subr.bf16.mxu0 0
    %237 = vmatpush1.bf16.msra.mxu0 %v218
    %238 = vmatprep.subr.bf16.mxu0 0
    %239 = vmatpush1.bf16.msra.mxu0 %v219
    %240 = vmatprep.subr.bf16.mxu0 0
    %241 = vmatpush1.bf16.msra.mxu0 %v220
    %242 = vmatprep.subr.bf16.mxu0 0
    %243 = vmatpush1.bf16.msra.mxu0 %v221
    %244 = vmatprep.subr.bf16.mxu0 0
    %245 = vmatpush1.bf16.msra.mxu0 %v222
    %246 = vmatprep.subr.bf16.mxu0 0
    %247 = vmatpush1.bf16.msra.mxu0 %v223
    %248 = vmatprep.subr.bf16.mxu0 0
    %249 = vmatpush1.bf16.msra.mxu0 0
    %250 = vmatprep.subr.bf16.mxu0 0
    %251 = vmatpush1.bf16.msra.mxu0 0
    %252 = vmatprep.subr.bf16.mxu0 0
    %253 = vmatpush1.bf16.msra.mxu0 0
    %254 = vmatprep.subr.bf16.mxu0 0
    %255 = vmatpush1.bf16.msra.mxu0 0
    %256 = vmatprep.subr.bf16.mxu0 0
    %257 = vmatpush1.bf16.msra.mxu0 0
    %258 = vmatprep.subr.bf16.mxu0 0
    %259 = vmatpush1.bf16.msra.mxu0 0
    %260 = vmatprep.subr.bf16.mxu0 0
    %261 = vmatpush1.bf16.msra.mxu0 0
    %262 = vmatprep.subr.bf16.mxu0 0
    %263 = vmatpush1.bf16.msra.mxu0 0
    %264 = vmatprep.mubr.bf16.mxu0 0
    %265 = vmatmul.mubr.bf16.gmra.mrb[0].mxu0 %v161
    %v266 = vpop.f32.mrb[0].mxu0
    %v267 = vadd.f32 %v183, %v266
    %v268 = vpop.f32.mrb[0].mxu0
    %v269 = vpop.f32.mrb[0].mxu0
    %v270 = vpop.f32.mrb[0].mxu0
    %271 = vdwg.mxu0
    %v272 = vmax.f32 %v267, 0.0
    %v273 = vpack.c.bf16 %v272, %v272
    %v274 = vld [vmem:[%s5] sm:$0xf]
    %v275 = vld [vmem:[%s5 + $0x4] sm:$0xf]
    %v276 = vld [vmem:[%s5 + $0x8] sm:$0xf]
    %v277 = vld [vmem:[%s5 + $0xc] sm:$0xf]
    %v278 = vld [vmem:[%s5 + $0x10] sm:$0xf]
    %v279 = vld [vmem:[%s5 + $0x14] sm:$0xf]
    %v280 = vld [vmem:[%s5 + $0x18] sm:$0xf]
    %v281 = vld [vmem:[%s5 + $0x1c] sm:$0xf]
    %v282 = vld [vmem:[%s5 + $0x20] sm:$0xf]
    %v283 = vld [vmem:[%s5 + $0x24] sm:$0xf]
    %v284 = vld [vmem:[%s5 + $0x28] sm:$0xf]
    %v285 = vld [vmem:[%s5 + $0x2c] sm:$0xf]
    %v286 = vld [vmem:[%s5 + $0x30] sm:$0xf]
    %v287 = vld [vmem:[%s5 + $0x34] sm:$0xf]
    %v288 = vld [vmem:[%s5 + $0x38] sm:$0xf]
    %v289 = vld [vmem:[%s5 + $0x3c] sm:$0xf]
    %v290 = vld [vmem:[%s5 + $0x40] sm:$0x1]
    %v291 = vunpack.c.l.bf16 %v290
    %v292 = vlaneseq
    %v293 = vshrl.u32 %v292, 7
    %v294 = vsub.s32 0, %v293
    %v295 = vrot.slane %v291, %v294
    %v312 = vunpack.c.l.b16 %v274
    %v313 = vunpack.c.l.b16 %v275
    %v314 = vunpack.c.l.b16 %v276
    %v315 = vunpack.c.l.b16 %v277
    %v316 = vunpack.c.l.b16 %v278
    %v317 = vunpack.c.l.b16 %v279
    %v318 = vunpack.c.l.b16 %v280
    %v319 = vunpack.c.l.b16 %v281
    %v320 = vunpack.c.l.b16 %v282
    %v321 = vunpack.c.l.b16 %v283
    %v322 = vunpack.c.l.b16 %v284
    %v323 = vunpack.c.l.b16 %v285
    %v324 = vunpack.c.l.b16 %v286
    %v325 = vunpack.c.l.b16 %v287
    %v326 = vunpack.c.l.b16 %v288
    %v327 = vunpack.c.l.b16 %v289
    %v328 = vpack.c.b16 %v313, %v312
    %v329 = vpack.c.b16 %v315, %v314
    %v330 = vpack.c.b16 %v317, %v316
    %v331 = vpack.c.b16 %v319, %v318
    %v332 = vpack.c.b16 %v321, %v320
    %v333 = vpack.c.b16 %v323, %v322
    %v334 = vpack.c.b16 %v325, %v324
    %v335 = vpack.c.b16 %v327, %v326
    %344 = vmatprep.subr.bf16.mxu0 0
    %345 = vmatpush1.bf16.msra.mxu0 %v328
    %346 = vmatprep.subr.bf16.mxu0 0
    %347 = vmatpush1.bf16.msra.mxu0 %v329
    %348 = vmatprep.subr.bf16.mxu0 0
    %349 = vmatpush1.bf16.msra.mxu0 %v330
    %350 = vmatprep.subr.bf16.mxu0 0
    %351 = vmatpush1.bf16.msra.mxu0 %v331
    %352 = vmatprep.subr.bf16.mxu0 0
    %353 = vmatpush1.bf16.msra.mxu0 %v332
    %354 = vmatprep.subr.bf16.mxu0 0
    %355 = vmatpush1.bf16.msra.mxu0 %v333
    %356 = vmatprep.subr.bf16.mxu0 0
    %357 = vmatpush1.bf16.msra.mxu0 %v334
    %358 = vmatprep.subr.bf16.mxu0 0
    %359 = vmatpush1.bf16.msra.mxu0 %v335
    %360 = vmatprep.subr.bf16.mxu0 0
    %361 = vmatpush1.bf16.msra.mxu0 0
    %362 = vmatprep.subr.bf16.mxu0 0
    %363 = vmatpush1.bf16.msra.mxu0 0
    %364 = vmatprep.subr.bf16.mxu0 0
    %365 = vmatpush1.bf16.msra.mxu0 0
    %366 = vmatprep.subr.bf16.mxu0 0
    %367 = vmatpush1.bf16.msra.mxu0 0
    %368 = vmatprep.subr.bf16.mxu0 0
    %369 = vmatpush1.bf16.msra.mxu0 0
    %370 = vmatprep.subr.bf16.mxu0 0
    %371 = vmatpush1.bf16.msra.mxu0 0
    %372 = vmatprep.subr.bf16.mxu0 0
    %373 = vmatpush1.bf16.msra.mxu0 0
    %374 = vmatprep.subr.bf16.mxu0 0
    %375 = vmatpush1.bf16.msra.mxu0 0
    %376 = vmatprep.mubr.bf16.mxu0 0
    %377 = vmatmul.mubr.bf16.gmra.mrb[0].mxu0 %v273
    %v378 = vpop.f32.mrb[0].mxu0
    %v379 = vadd.f32 %v295, %v378
    %v380 = vpop.f32.mrb[0].mxu0
    %v381 = vpop.f32.mrb[0].mxu0
    %v382 = vpop.f32.mrb[0].mxu0
    %383 = vdwg.mxu0
    %vm384 = vcmask 48128
    %v385 = vsel %vm384, %v379, -inf
    %386 = vmax.xlane.f32.xlu0 %v385
    %v387 = vpop.xlane.xlu0 %386
    %v388 = vsub.f32 %v379, %v387
    %v389 = vmul.f32 %v388, 1.442695
    %v390 = vpow.pop %v389
    %v391 = vsel %vm384, %v390, 0.0
    %392 = vadd.xlane.f32.xlu0 %v391
    %v393 = vpop.xlane.xlu0 %392
    %v394 = vlog2.pop %v393
    %v395 = vmul.f32 %v394, 0.6931472
    %v396 = vsub.f32 %v388, %v395
    %v397 = vlaneseq
    %v398 = vand.u32 %v397, 127
    %v399 = vld [vmem:[%s2] sm:$0xff]
    %v400 = vadd.f32 %v379, %v399
    %v401 = vsel %vm384, %v400, -inf
    %402 = vmax.xlane.f32.xlu0 %v401
    %v403 = vpop.xlane.xlu0 %402
    %vm404 = vcmp.ge.f32.partialorder %v400, %v403
    %v405 = vsel %vm404, %v398, 6
    %v406 = vsel %vm384, %v405, 2147483647
    %v407 = vand.u32 %v406, 65535
    %v408 = vshra.s32 %v406, 16
    %v409 = vcvt.s32.f32 %v407
    %v410 = vcvt.s32.f32 %v408
    %411 = vmin.xlane.f32.xlu0 %v410
    %v412 = vpop.xlane.xlu0 %411
    %vm413 = vcmp.eq.f32.partialorder %v410, %v412
    %v414 = vsel %vm413, %v409, inf
    %415 = vmin.xlane.f32.xlu0 %v414
    %v416 = vpop.xlane.xlu0 %415
    %v417 = vcvt.f32.s32 %v416
    %v418 = vcvt.f32.s32 %v412
    %v419 = vshll.u32 %v418, 16
    %v420 = vadd.s32 %v419, %v417
    %vm421 = vcmp.eq.s32.totalorder %v398, %v420
    %v422 = vsel %vm421, %v396, 0.0
    %v423 = vsel %vm384, %v422, 0.0
    %424 = vadd.xlane.f32.xlu0 %v423
    %v425 = vpop.xlane.xlu0 %424
    %vm426 = vcmp.eq.s32.totalorder %v398, 0
    %v427 = vcvt.s32.f32 %v420
    %v428 = vsel %vm426, %v425, %v427
    %vm429 = vcmask 15360
    %430 = vst.msk [vmem:[%s6] sm:$0xff] %vm429, %v428
    // Predicated region
    $region34: #{policy_forward.1} parent=1 // pred_check
      _
    $region35: #{policy_forward.1} parent=1 // pred_check_branch
      %432 = sbr.rel (0) target = $region37
    $region36: #{policy_forward.1} parent=1 // pred_region
      _
    $region37: #{policy_forward.1} parent=1 // pred_fallthru
      _
    // Predicated region
    $region38: #{policy_forward.1} parent=1 // pred_check
      _
    $region39: #{policy_forward.1} parent=1 // pred_check_branch
      %434 = sbr.rel (0) target = $region41
    $region40: #{policy_forward.1} parent=1 // pred_region
      _
    $region41: #{policy_forward.1} parent=1 // pred_fallthru
      _
    %435 = vsyncpa [#allocation3], 1
    %436 = vsyncpa [#allocation5], 1

</llo_original>
